<compile_context>
chip_gen: v7x
topology: tpu7x:2x2x1
jax: 0.10.0
libtpu: 0.0.40
codegen_flags: <defaults>
</compile_context>

<pallas_src>
import jax
import jax.numpy as jnp
from jax.experimental import pallas as pl
from jax.experimental.pallas import tpu as pltpu


def _ce_kernel(logits_ref, labels_ref, loss_ref):
    # logits_ref: (TN, C) native dtype; labels_ref: (1, TN) i32; loss_ref: (1, TN) f32
    logits = logits_ref[...].astype(jnp.float32)      # f32 math (stable logsumexp, v5e-safe)
    labels_col = jnp.transpose(labels_ref[...])       # (1,TN) -> (TN,1): XLU relayout, free slot

    # numerically stable log-sum-exp along the class (lane) axis
    m = jnp.max(logits, axis=-1, keepdims=True)
    lse = m + jnp.log(jnp.sum(jnp.exp(logits - m), axis=-1, keepdims=True))

    # gather the label logit via a one-hot mask (avoids dynamic gather on TPU)
    # NOTE: out-of-range labels silently pick 0.0 (PyTorch would raise); not replicated here.
    col = jax.lax.broadcasted_iota(jnp.int32, logits.shape, dimension=1)
    picked = jnp.sum(jnp.where(col == labels_col, logits, 0.0), axis=-1, keepdims=True)

    loss_col = lse - picked                            # (TN, 1)
    # lane-dense store: relayout (TN,1) -> (1,TN) on the XLU, then a single unmasked row store
    loss_ref[...] = jnp.transpose(loss_col).astype(loss_ref.dtype)


def _vmem_budget():
    """(vmem_limit_bytes, per-step working-set budget) derived from real HW capacity."""
    try:
        cap = int(getattr(pltpu.get_tpu_info(), "vmem_capacity_bytes", 0)) or (64 << 20)
    except Exception:
        cap = 64 << 20                      # conservative fallback (v7x per-TC size)
    limit = min((cap * 3) // 4, 96 << 20)   # leave headroom for compiler scratch
    limit = max(limit, 32 << 20)
    block_budget = limit // 2               # per-grid-step working-set target
    return int(limit), int(block_budget)


def _choose_tile_n(n: int, c: int, dtype, budget_bytes: int) -> int:
    """Largest row block whose full f32 working set fits the per-step VMEM budget."""
    s = jnp.dtype(dtype).itemsize
    # 2x native block (double-buffered input stream) + ~4 f32-sized elementwise temps
    # (f32 upcast, exp/sub temp, int32 iota, one-hot select) per element.
    per_row_bytes = max(c * (2 * s + 16), 1)
    t = budget_bytes // per_row_bytes
    if n >= 4 * 128:
        # keep >= 4 grid steps: v7x's two TCs both get work; DMA overlaps compute.
        t = min(t, ((n // 4) // 128) * 128)
    if t >= n:
        return int(n)                       # single full block (full-dim blocks always legal)
    # lane-dense labels/loss blocks require their lane dim to be a multiple of 128.
    t = max((t // 128) * 128, 128)
    # TODO(synk): for very large C the minimum 128-row block may still exceed VMEM;
    # an in-kernel online logsumexp over class chunks would bound temporaries there.
    return int(t)


def pointwise_loss(pos_score: jax.Array, labels: jax.Array, *,
                   tile_n: int | None = None) -> jax.Array:
    """Per-example cross-entropy loss (reduction='none').

    pos_score: [N, C] float logits (f32 or bf16; streamed in native dtype)
    labels   : [N]    integer class indices
    returns  : [N]    float32 per-example loss
    """
    n, c = pos_score.shape
    vmem_limit, block_budget = _vmem_budget()

    if tile_n is None:
        tile_n = _choose_tile_n(n, c, pos_score.dtype, block_budget)
    else:
        tile_n = int(tile_n)
        if tile_n >= n:
            tile_n = n
        else:
            tile_n = max((tile_n // 128) * 128, 128)

    labels_row = labels.astype(jnp.int32).reshape(1, n)       # lane-dense labels
    grid = (pl.cdiv(n, tile_n),)                               # ragged last block masked by Pallas

    out = pl.pallas_call(
        _ce_kernel,
        out_shape=jax.ShapeDtypeStruct((1, n), jnp.float32),   # lane-dense loss
        grid_spec=pltpu.PrefetchScalarGridSpec(
            num_scalar_prefetch=0,
            grid=grid,
            in_specs=[
                pl.BlockSpec((tile_n, c), lambda i: (i, 0)),
                pl.BlockSpec((1, tile_n), lambda i: (0, i)),
            ],
            out_specs=pl.BlockSpec((1, tile_n), lambda i: (0, i)),
        ),
        compiler_params=pltpu.CompilerParams(
            dimension_semantics=("parallel",),
            vmem_limit_bytes=vmem_limit,
        ),
    )(pos_score, labels_row)

    return out.reshape(n)


def _reference(pos_score, labels):
    # plain-JAX reference (same math as F.cross_entropy, reduction='none')
    x = pos_score.astype(jnp.float32)
    logz = jax.scipy.special.logsumexp(x, axis=-1)
    picked = jnp.take_along_axis(x, labels[:, None].astype(jnp.int32), axis=-1)[:, 0]
    return logz - picked


if __name__ == "__main__":
    key = jax.random.PRNGKey(0)
    k1, k2, k3, k4, k5, k6 = jax.random.split(key, 6)

    # Case 1: small lane-friendly shape, f32, single block.
    N, C = 64, 128
    x = jax.random.normal(k1, (N, C), dtype=jnp.float32)
    y = jax.random.randint(k2, (N,), 0, C, dtype=jnp.int32)
    loss = pointwise_loss(x, y)
    jax.block_until_ready(loss)
    assert loss.shape == (N,)
    assert jnp.allclose(loss, _reference(x, y), atol=1e-5, rtol=1e-5)

    # Case 2: ragged N and narrow C (full-dim block, lane-padded class reduction).
    N2, C2 = 50, 40
    x2 = jax.random.normal(k3, (N2, C2), dtype=jnp.float32)
    y2 = jax.random.randint(k4, (N2,), 0, C2, dtype=jnp.int32)
    loss2 = pointwise_loss(x2, y2)
    jax.block_until_ready(loss2)
    assert loss2.shape == (N2,)
    assert jnp.allclose(loss2, _reference(x2, y2), atol=1e-5, rtol=1e-5)

    # Case 3: bf16 logits DMA'd as bf16 (half the read bytes), f32 math in kernel.
    xb = x.astype(jnp.bfloat16)
    loss3 = pointwise_loss(xb, y)
    jax.block_until_ready(loss3)
    assert jnp.allclose(loss3, _reference(xb, y), atol=1e-4, rtol=1e-4)

    # Case 4: multi-step grid with a partial last block (exercises the tiled
    # lane-dense labels/loss path and Pallas partial-block masking).
    N4, C4 = 300, 128
    x4 = jax.random.normal(k5, (N4, C4), dtype=jnp.float32)
    y4 = jax.random.randint(k6, (N4,), 0, C4, dtype=jnp.int32)
    loss4 = pointwise_loss(x4, y4, tile_n=128)
    jax.block_until_ready(loss4)
    assert loss4.shape == (N4,)
    assert jnp.allclose(loss4, _reference(x4, y4), atol=1e-5, rtol=1e-5)

    print("KERNEL_OK")
</pallas_src>

<mosaic_0001>
module attributes {stable_mosaic.version = 11 : i64} {
  func.func @_ce_kernel(%arg0: i32, %arg1: memref<64x128xf32, #tpu.memory_space<vmem>>, %arg2: memref<1x64xi32, #tpu.memory_space<vmem>>, %arg3: memref<1x64xf32, #tpu.memory_space<vmem>>) attributes {dimension_semantics = [#tpu.dimension_semantics<parallel>], iteration_bounds = array<i64: 1>, scalar_prefetch = 0 : i64, scratch_operands = 0 : i64, tpu.core_type = #tpu.core_type<tc>, window_params = [{transform_indices = @transform_0, window_bounds = array<i64: 64, 128>}, {transform_indices = @transform_1, window_bounds = array<i64: 1, 64>}, {transform_indices = @transform_2, window_bounds = array<i64: 1, 64>}]} {
    %c0 = arith.constant 0 : index
    %c0_0 = arith.constant 0 : index
    %0 = vector.load %arg1[%c0, %c0_0] : memref<64x128xf32, #tpu.memory_space<vmem>>, vector<64x128xf32>
    %c0_1 = arith.constant 0 : index
    %c0_2 = arith.constant 0 : index
    %1 = vector.load %arg2[%c0_1, %c0_2] : memref<1x64xi32, #tpu.memory_space<vmem>>, vector<1x64xi32>
    %2 = tpu.transpose %1, [1, 0] : vector<1x64xi32> -> vector<64x1xi32>
    %cst = arith.constant dense<0xFF800000> : vector<64xf32>
    %3 = vector.multi_reduction <maximumf>, %0, %cst [1] : vector<64x128xf32> to vector<64xf32>
    %4 = vector.shape_cast %3 : vector<64xf32> to vector<64x1xf32>
    %5 = vector.broadcast %4 : vector<64x1xf32> to vector<64x128xf32>
    %6 = arith.subf %0, %5 : vector<64x128xf32>
    %7 = math.exp %6 : vector<64x128xf32>
    %cst_3 = arith.constant dense<0.000000e+00> : vector<64xf32>
    %8 = vector.multi_reduction <add>, %7, %cst_3 [1] : vector<64x128xf32> to vector<64xf32>
    %9 = vector.shape_cast %8 : vector<64xf32> to vector<64x1xf32>
    %10 = math.log %9 : vector<64x1xf32>
    %11 = arith.addf %4, %10 : vector<64x1xf32>
    %12 = tpu.iota {dimensions = array<i32: 1>} : vector<64x128xi32>
    %13 = vector.broadcast %2 : vector<64x1xi32> to vector<64x128xi32>
    %14 = arith.cmpi eq, %12, %13 : vector<64x128xi32>
    %cst_4 = arith.constant 0.000000e+00 : f32
    %15 = vector.broadcast %cst_4 : f32 to vector<64x128xf32>
    %16 = arith.select %14, %0, %15 : vector<64x128xi1>, vector<64x128xf32>
    %cst_5 = arith.constant dense<0.000000e+00> : vector<64xf32>
    %17 = vector.multi_reduction <add>, %16, %cst_5 [1] : vector<64x128xf32> to vector<64xf32>
    %18 = vector.shape_cast %17 : vector<64xf32> to vector<64x1xf32>
    %19 = arith.subf %11, %18 : vector<64x1xf32>
    %20 = tpu.transpose %19, [1, 0] : vector<64x1xf32> -> vector<1x64xf32>
    %c0_6 = arith.constant 0 : index
    %c0_7 = arith.constant 0 : index
    %21 = vector.load %arg3[%c0_6, %c0_7] : memref<1x64xf32, #tpu.memory_space<vmem>>, vector<1x64xf32>
    tpu.vector_store %arg3[%c0_6, %c0_7], %20 {strides = array<i32>} : memref<1x64xf32, #tpu.memory_space<vmem>>, vector<1x64xf32>,
    return
  }
  func.func @transform_0(%arg0: i32) -> (i32, i32) {
    %c0_i32 = arith.constant 0 : i32
    %c0_i32_0 = arith.constant 0 : i32
    return %arg0, %c0_i32 : i32, i32
  }
  func.func @transform_1(%arg0: i32) -> (i32, i32) {
    %c0_i32 = arith.constant 0 : i32
    %c0_i32_0 = arith.constant 0 : i32
    return %c0_i32, %arg0 : i32, i32
  }
  func.func @transform_2(%arg0: i32) -> (i32, i32) {
    %c0_i32 = arith.constant 0 : i32
    %c0_i32_0 = arith.constant 0 : i32
    return %c0_i32, %arg0 : i32, i32
  }
}

</mosaic_0001>

<llo_original>
// kernel: tpu_custom_call.1
$region0: #{tpu_custom_call.1}
  #allocation0 [shape = 'u32[]', space=smem, size = 0x4, offset = 0x4, fixed_abs, tag = 'smem constant byte address 0x4 - core index']
  #allocation1 [shape = 'u32[144,128]{1,0:T(1,128)}', space=vmem, size = 0x12000, scoped, tag = 'internal scratch']
  %s0 = inlined_call_operand.hbm [shape: f32[64,128], index: 0, kind: input, shape index: {}]
  %s1 = inlined_call_operand.vmem [shape: s32[1,64], index: 1, kind: input, shape index: {}]
  %s2 = inlined_call_operand.hbm [shape: f32[1,64], index: 2, kind: output, shape index: {}]
  %s3 = sld [smem:[#allocation0]]
  $region22: #{tpu_custom_call.1} parent=0
    _
  %s5 = ssub.s32 1, %s3
  %s6 = scalar_select 0, %s5, %s3
  $region1: #{tpu_custom_call.1} parent=0
    #allocation2 [shape = 'u8[32768]{0}', space=vmem, size = 0x8000, scoped, tag = 'input window, operand 0, single buffered']
    #allocation3 [shape = 's32[1]{0}', space=sflag, size = 0x4, scoped, tag = 'scoped memory for tpu_custom_call.1']
    #allocation4 [shape = 's32[1]{0}', space=sflag, size = 0x4, scoped, tag = 'scoped memory for tpu_custom_call.1']
    #allocation5 [shape = 'u8[512]{0}', space=vmem, size = 0x400, scoped, tag = 'output window, operand 0, single buffered']
    %7 = vsyncpa [#allocation3], 0
    %8 = vsyncpa [#allocation4], 0
    // Predicated region
    $region2: #{tpu_custom_call.1} parent=1 // pred_check
      _
    $region3: #{tpu_custom_call.1} parent=1 // pred_check_branch
      %10 = sbr.rel (0) target = $region5
    $region4: #{tpu_custom_call.1} parent=1 // pred_region
      %s12 = ssub.s32 1024, 1024
      %13 = vsyncadd [#allocation3], %s12
      %s14 = sshll.u32 [#allocation2], 4
      %s15 = int_to_ptr.vmem [resolvable:$true] %s14
      %20 = dma.hbm_to_vmem [thread:$0]  %s0, 1024, %s15, [#allocation3], 128, 128, 8
    $region5: #{tpu_custom_call.1} parent=1 // pred_fallthru
      _
    // Predicated region
    $region6: #{tpu_custom_call.1} parent=1 // pred_check
      _
    $region7: #{tpu_custom_call.1} parent=1 // pred_check_branch
      %22 = sbr.rel (0) target = $region9
    $region8: #{tpu_custom_call.1} parent=1 // pred_region
      _
    $region9: #{tpu_custom_call.1} parent=1 // pred_fallthru
      _
    // Predicated region
    $region10: #{tpu_custom_call.1} parent=1 // pred_check
      _
    $region11: #{tpu_custom_call.1} parent=1 // pred_check_branch
      %24 = sbr.rel (0) target = $region13
    $region12: #{tpu_custom_call.1} parent=1 // pred_region
      %25 = dma.done [#allocation3], 1024
    $region13: #{tpu_custom_call.1} parent=1 // pred_fallthru
      _
    %v26 = vld [vmem:[#allocation2] sm:$0xff]
    %v27 = vld [vmem:[#allocation2 + $0x8] sm:$0xff]
    %v28 = vld [vmem:[#allocation2 + $0x10] sm:$0xff]
    %v29 = vld [vmem:[#allocation2 + $0x18] sm:$0xff]
    %v30 = vld [vmem:[#allocation2 + $0x20] sm:$0xff]
    %v31 = vld [vmem:[#allocation2 + $0x28] sm:$0xff]
    %v32 = vld [vmem:[#allocation2 + $0x30] sm:$0xff]
    %v33 = vld [vmem:[#allocation2 + $0x38] sm:$0xff]
    %v34 = vld [vmem:[%s1] sm:$0x1]
    %35 = vxpose.xlu0.b32.start [1/16] %v34, 128
    %36 = vxpose.xlu0.b32.cont [2/16] 0, 128
    %37 = vxpose.xlu0.b32.cont [3/16] 0, 128
    %38 = vxpose.xlu0.b32.cont [4/16] 0, 128
    %39 = vxpose.xlu0.b32.cont [5/16] 0, 128
    %40 = vxpose.xlu0.b32.cont [6/16] 0, 128
    %41 = vxpose.xlu0.b32.cont [7/16] 0, 128
    %42 = vxpose.xlu0.b32.cont [8/16] 0, 128
    %43 = vxpose.xlu0.b32.cont [9/16] 0, 128
    %44 = vxpose.xlu0.b32.cont [10/16] 0, 128
    %45 = vxpose.xlu0.b32.cont [11/16] 0, 128
    %46 = vxpose.xlu0.b32.cont [12/16] 0, 128
    %47 = vxpose.xlu0.b32.cont [13/16] 0, 128
    %48 = vxpose.xlu0.b32.cont [14/16] 0, 128
    %49 = vxpose.xlu0.b32.cont [15/16] 0, 128
    %50 = vxpose.xlu0.b32.end [16/16] 0, 128
    %v51 = vpop.trf.xlu0
    %v52 = vpop.trf.xlu0
    %v53 = vpop.trf.xlu0
    %v54 = vpop.trf.xlu0
    %v55 = vpop.trf.xlu0
    %v56 = vpop.trf.xlu0
    %v57 = vpop.trf.xlu0
    %v58 = vpop.trf.xlu0
    %v59 = vpop.trf.xlu0
    %v60 = vpop.trf.xlu0
    %v61 = vpop.trf.xlu0
    %v62 = vpop.trf.xlu0
    %v63 = vpop.trf.xlu0
    %v64 = vpop.trf.xlu0
    %v65 = vpop.trf.xlu0
    %v66 = vpop.trf.xlu0
    %67 = vmax.xlane.f32.xlu0 %v26
    %v68 = vpop.xlane.xlu0 %67
    %69 = vmax.xlane.f32.xlu0 %v27
    %v70 = vpop.xlane.xlu0 %69
    %71 = vmax.xlane.f32.xlu0 %v28
    %v72 = vpop.xlane.xlu0 %71
    %73 = vmax.xlane.f32.xlu0 %v29
    %v74 = vpop.xlane.xlu0 %73
    %75 = vmax.xlane.f32.xlu0 %v30
    %v76 = vpop.xlane.xlu0 %75
    %77 = vmax.xlane.f32.xlu0 %v31
    %v78 = vpop.xlane.xlu0 %77
    %79 = vmax.xlane.f32.xlu0 %v32
    %v80 = vpop.xlane.xlu0 %79
    %81 = vmax.xlane.f32.xlu0 %v33
    %v82 = vpop.xlane.xlu0 %81
    %v83 = vsub.f32 %v26, %v68
    %v84 = vsub.f32 %v27, %v70
    %v85 = vsub.f32 %v28, %v72
    %v86 = vsub.f32 %v29, %v74
    %v87 = vsub.f32 %v30, %v76
    %v88 = vsub.f32 %v31, %v78
    %v89 = vsub.f32 %v32, %v80
    %v90 = vsub.f32 %v33, %v82
    %v91 = vmul.f32 %v83, 1.442695
    %v92 = vpow.pop %v91
    %v93 = vmul.f32 %v84, 1.442695
    %v94 = vpow.pop %v93
    %v95 = vmul.f32 %v85, 1.442695
    %v96 = vpow.pop %v95
    %v97 = vmul.f32 %v86, 1.442695
    %v98 = vpow.pop %v97
    %v99 = vmul.f32 %v87, 1.442695
    %v100 = vpow.pop %v99
    %v101 = vmul.f32 %v88, 1.442695
    %v102 = vpow.pop %v101
    %v103 = vmul.f32 %v89, 1.442695
    %v104 = vpow.pop %v103
    %v105 = vmul.f32 %v90, 1.442695
    %v106 = vpow.pop %v105
    %107 = vadd.xlane.f32.xlu0 %v92
    %v108 = vpop.xlane.xlu0 %107
    %109 = vadd.xlane.f32.xlu0 %v94
    %v110 = vpop.xlane.xlu0 %109
    %111 = vadd.xlane.f32.xlu0 %v96
    %v112 = vpop.xlane.xlu0 %111
    %113 = vadd.xlane.f32.xlu0 %v98
    %v114 = vpop.xlane.xlu0 %113
    %115 = vadd.xlane.f32.xlu0 %v100
    %v116 = vpop.xlane.xlu0 %115
    %117 = vadd.xlane.f32.xlu0 %v102
    %v118 = vpop.xlane.xlu0 %117
    %119 = vadd.xlane.f32.xlu0 %v104
    %v120 = vpop.xlane.xlu0 %119
    %121 = vadd.xlane.f32.xlu0 %v106
    %v122 = vpop.xlane.xlu0 %121
    %v123 = vlog2.pop %v108
    %v124 = vmul.f32 %v123, 0.6931472
    %v125 = vlog2.pop %v110
    %v126 = vmul.f32 %v125, 0.6931472
    %v127 = vlog2.pop %v112
    %v128 = vmul.f32 %v127, 0.6931472
    %v129 = vlog2.pop %v114
    %v130 = vmul.f32 %v129, 0.6931472
    %v131 = vlog2.pop %v116
    %v132 = vmul.f32 %v131, 0.6931472
    %v133 = vlog2.pop %v118
    %v134 = vmul.f32 %v133, 0.6931472
    %v135 = vlog2.pop %v120
    %v136 = vmul.f32 %v135, 0.6931472
    %v137 = vlog2.pop %v122
    %v138 = vmul.f32 %v137, 0.6931472
    %v139 = vadd.f32 %v68, %v124
    %v140 = vadd.f32 %v70, %v126
    %v141 = vadd.f32 %v72, %v128
    %v142 = vadd.f32 %v74, %v130
    %v143 = vadd.f32 %v76, %v132
    %v144 = vadd.f32 %v78, %v134
    %v145 = vadd.f32 %v80, %v136
    %v146 = vadd.f32 %v82, %v138
    %v147 = vlaneseq
    %v148 = vand.u32 %v147, 127
    %149 = vset.pattern.permute.xlu0 0
    %150 = vperm.xlu0 %149, %v51
    %v151 = vpop.permute.xlu0 %150
    %152 = vset.pattern.permute.xlu0 0
    %153 = vperm.xlu0 %152, %v52
    %v154 = vpop.permute.xlu0 %153
    %155 = vset.pattern.permute.xlu0 0
    %156 = vperm.xlu0 %155, %v53
    %v157 = vpop.permute.xlu0 %156
    %158 = vset.pattern.permute.xlu0 0
    %159 = vperm.xlu0 %158, %v54
    %v160 = vpop.permute.xlu0 %159
    %161 = vset.pattern.permute.xlu0 0
    %162 = vperm.xlu0 %161, %v55
    %v163 = vpop.permute.xlu0 %162
    %164 = vset.pattern.permute.xlu0 0
    %165 = vperm.xlu0 %164, %v56
    %v166 = vpop.permute.xlu0 %165
    %167 = vset.pattern.permute.xlu0 0
    %168 = vperm.xlu0 %167, %v57
    %v169 = vpop.permute.xlu0 %168
    %170 = vset.pattern.permute.xlu0 0
    %171 = vperm.xlu0 %170, %v58
    %v172 = vpop.permute.xlu0 %171
    %vm173 = vcmp.eq.s32.totalorder %v148, %v151
    %vm174 = vcmp.eq.s32.totalorder %v148, %v154
    %vm175 = vcmp.eq.s32.totalorder %v148, %v157
    %vm176 = vcmp.eq.s32.totalorder %v148, %v160
    %vm177 = vcmp.eq.s32.totalorder %v148, %v163
    %vm178 = vcmp.eq.s32.totalorder %v148, %v166
    %vm179 = vcmp.eq.s32.totalorder %v148, %v169
    %vm180 = vcmp.eq.s32.totalorder %v148, %v172
    %v181 = vsel %vm173, %v26, 0.0
    %v182 = vsel %vm174, %v27, 0.0
    %v183 = vsel %vm175, %v28, 0.0
    %v184 = vsel %vm176, %v29, 0.0
    %v185 = vsel %vm177, %v30, 0.0
    %v186 = vsel %vm178, %v31, 0.0
    %v187 = vsel %vm179, %v32, 0.0
    %v188 = vsel %vm180, %v33, 0.0
    %189 = vadd.xlane.f32.xlu0 %v181
    %v190 = vpop.xlane.xlu0 %189
    %191 = vadd.xlane.f32.xlu0 %v182
    %v192 = vpop.xlane.xlu0 %191
    %193 = vadd.xlane.f32.xlu0 %v183
    %v194 = vpop.xlane.xlu0 %193
    %195 = vadd.xlane.f32.xlu0 %v184
    %v196 = vpop.xlane.xlu0 %195
    %197 = vadd.xlane.f32.xlu0 %v185
    %v198 = vpop.xlane.xlu0 %197
    %199 = vadd.xlane.f32.xlu0 %v186
    %v200 = vpop.xlane.xlu0 %199
    %201 = vadd.xlane.f32.xlu0 %v187
    %v202 = vpop.xlane.xlu0 %201
    %203 = vadd.xlane.f32.xlu0 %v188
    %v204 = vpop.xlane.xlu0 %203
    %v205 = vsub.f32 %v139, %v190
    %v206 = vsub.f32 %v140, %v192
    %v207 = vsub.f32 %v141, %v194
    %v208 = vsub.f32 %v142, %v196
    %v209 = vsub.f32 %v143, %v198
    %v210 = vsub.f32 %v144, %v200
    %v211 = vsub.f32 %v145, %v202
    %v212 = vsub.f32 %v146, %v204
    %213 = vxpose.xlu0.b32.start [1/16] %v205, 128
    %214 = vxpose.xlu0.b32.cont [2/16] %v206, 128
    %215 = vxpose.xlu0.b32.cont [3/16] %v207, 128
    %216 = vxpose.xlu0.b32.cont [4/16] %v208, 128
    %217 = vxpose.xlu0.b32.cont [5/16] %v209, 128
    %218 = vxpose.xlu0.b32.cont [6/16] %v210, 128
    %219 = vxpose.xlu0.b32.cont [7/16] %v211, 128
    %220 = vxpose.xlu0.b32.cont [8/16] %v212, 128
    %221 = vxpose.xlu0.b32.cont [9/16] 0.0, 128
    %222 = vxpose.xlu0.b32.cont [10/16] 0.0, 128
    %223 = vxpose.xlu0.b32.cont [11/16] 0.0, 128
    %224 = vxpose.xlu0.b32.cont [12/16] 0.0, 128
    %225 = vxpose.xlu0.b32.cont [13/16] 0.0, 128
    %226 = vxpose.xlu0.b32.cont [14/16] 0.0, 128
    %227 = vxpose.xlu0.b32.cont [15/16] 0.0, 128
    %228 = vxpose.xlu0.b32.end [16/16] 0.0, 128
    %v229 = vpop.trf.xlu0
    %v230 = vpop.trf.xlu0
    %v231 = vpop.trf.xlu0
    %v232 = vpop.trf.xlu0
    %v233 = vpop.trf.xlu0
    %v234 = vpop.trf.xlu0
    %v235 = vpop.trf.xlu0
    %v236 = vpop.trf.xlu0
    %v237 = vpop.trf.xlu0
    %v238 = vpop.trf.xlu0
    %v239 = vpop.trf.xlu0
    %v240 = vpop.trf.xlu0
    %v241 = vpop.trf.xlu0
    %v242 = vpop.trf.xlu0
    %v243 = vpop.trf.xlu0
    %v244 = vpop.trf.xlu0
    %vm245 = vcmask 516096
    %246 = vst.msk [vmem:[#allocation5] sm:$0x1] %vm245, %v229
    // Predicated region
    $region14: #{tpu_custom_call.1} parent=1 // pred_check
      _
    $region15: #{tpu_custom_call.1} parent=1 // pred_check_branch
      %248 = sbr.rel (0) target = $region17
    $region16: #{tpu_custom_call.1} parent=1 // pred_region
      %s250 = ssub.s32 16, 16
      %251 = vsyncadd [#allocation4], %s250
      %s253 = sshll.u32 [#allocation5], 4
      %s254 = int_to_ptr.vmem [resolvable:$true] %s253
      %256 = dma.vmem_to_hbm [thread:$0]  %s254, 16, %s2, [#allocation4]
    $region17: #{tpu_custom_call.1} parent=1 // pred_fallthru
      _
    // Predicated region
    $region18: #{tpu_custom_call.1} parent=1 // pred_check
      _
    $region19: #{tpu_custom_call.1} parent=1 // pred_check_branch
      %258 = sbr.rel (0) target = $region21
    $region20: #{tpu_custom_call.1} parent=1 // pred_region
      %259 = dma.done [#allocation4], 16
    $region21: #{tpu_custom_call.1} parent=1 // pred_fallthru
      _
    %260 = vsyncpa [#allocation3], 1
    %261 = vsyncpa [#allocation4], 1

</llo_original>
